<compile_context>
chip_gen: v5e
topology: v5e:2x2
jax: 0.10.0
libtpu: 0.0.40
codegen_flags: <defaults>
</compile_context>

<pallas_src>
import jax
import jax.numpy as jnp
from jax.experimental import pallas as pl
from jax.experimental.pallas import tpu as pltpu


def _cdiv(a, b):
    return (a + b - 1) // b


def _round_up(n, m):
    return ((n + m - 1) // m) * m


def _round_down(n, m):
    return (n // m) * m


def _chromatic_attention_kernel(x_ref, w1_ref, b1_ref, w2_ref, b2_ref, o_ref):
    # AdaptiveAvgPool1d(1) over the trailing length-1 axis is the identity on (B, C).
    x = x_ref[...]                                                 # (TB, L), native dtype
    # Squeeze-excite MLP: MXU matmuls with f32 accumulation; f32 epilogue on VPU/EUP.
    h = jnp.dot(x, w1_ref[...], preferred_element_type=jnp.float32) + b1_ref[...]
    h = jnp.maximum(h, 0.0)
    z = jnp.dot(h.astype(w2_ref.dtype), w2_ref[...],
                preferred_element_type=jnp.float32) + b2_ref[...]
    gate = jax.nn.sigmoid(z)
    # Gate applied in the native activation dtype (output precision is bounded by it anyway).
    o_ref[...] = x * gate.astype(x.dtype)


def _choose_batch_tile(bp, lane, itemsize, hp):
    """Rows per grid step: ~2 MiB of I/O per step, bounded by a VMEM budget that counts the
    double-buffered in/out tiles plus the kernel's f32 intermediates, and capped so the batch
    grid keeps several steps (pipeline overlap + v7x dual-TC sharding)."""
    if bp <= 8:
        return bp
    per_row = 4 * lane * itemsize + (2 * lane + 2 * hp) * 4        # tiles + f32 h/z/gate
    tb_vmem = max(8, _round_down((20 * 1024 * 1024) // per_row, 8))
    tb_bytes = max(8, _round_down((2 * 1024 * 1024) // (lane * itemsize), 8))
    tb_grid = max(8, 8 * _cdiv(_cdiv(bp, 8), 8))                   # keep >= ~8 grid steps
    return max(8, min(tb_vmem, tb_bytes, tb_grid, _round_down(bp, 8)))


_PARAM_SINGLE_BUFFER_OK = True   # flips off if pipeline_mode=pl.Buffered(1) is unsupported


def chromatic_attention(x, w1, b1, w2, b2):
    """out = x * sigmoid(relu(x @ w1 + b1) @ w2 + b2).

    x: (B, C).  w1: (C, H) and w2: (H, C) are the torch nn.Linear weights pre-transposed to
    (in, out); b1: (H,) or (1, H); b2: (C,) or (1, C).
    """
    global _PARAM_SINGLE_BUFFER_OK

    B, C = x.shape
    H = w1.shape[1]
    itemsize = x.dtype.itemsize

    b1 = jnp.asarray(b1, jnp.float32).reshape(1, H)                # biases stay f32
    b2 = jnp.asarray(b2, jnp.float32).reshape(1, C)
    w1 = w1.astype(x.dtype)                                        # bf16 I/O -> bf16 MXU ops
    w2 = w2.astype(x.dtype)

    # Lane-dense repack for small C: view (B, C) as (B//P, P*C) (free contiguous reshape) and
    # make the weights block-diagonal so each 128-lane row carries P independent batch rows.
    P = 1
    if C < 128 and 128 % C == 0 and B % (128 // C) == 0:
        P = 128 // C
    if P > 1:
        eye = jnp.eye(P, dtype=x.dtype)
        w1 = jnp.kron(eye, w1)                                     # (P*C, P*H) block-diag
        w2 = jnp.kron(eye, w2)                                     # (P*H, P*C) block-diag
        b1 = jnp.tile(b1, (1, P))
        b2 = jnp.tile(b2, (1, P))
    Bp, L, PH = B // P, P * C, P * H
    xp = x.reshape(Bp, L)

    # Pad the (tiny, VMEM-resident) hidden dim to a 128 multiple: padded units are inert
    # (relu(0 + 0) = 0 contributes nothing) and keep the MXU shapes well-aligned.
    HP = _round_up(PH, 128)
    if HP != PH:
        w1 = jnp.pad(w1, ((0, 0), (0, HP - PH)))
        b1 = jnp.pad(b1, ((0, 0), (0, HP - PH)))
        w2 = jnp.pad(w2, ((0, HP - PH), (0, 0)))

    # Only sub-8-row batches get padded (bounded to < 8 packed rows -> negligible traffic);
    # larger ragged batches rely on Pallas masking the partial last block.
    Bp_run = Bp
    if Bp < 8:
        xp = jnp.pad(xp, ((0, 8 - Bp), (0, 0)))
        Bp_run = 8

    TB = _choose_batch_tile(Bp_run, L, itemsize, HP)
    grid = (_cdiv(Bp_run, TB),)

    param_bytes = (w1.size + w2.size) * w1.dtype.itemsize + (b1.size + b2.size) * 4
    tile_bytes = TB * L * itemsize
    est = 4 * tile_bytes + 2 * param_bytes + TB * (2 * L + 2 * HP) * 4
    vmem_limit = int(min(48 * 1024 * 1024, max(2 * est, 32 * 1024 * 1024)))

    cost = pl.CostEstimate(
        flops=4 * B * C * H + 3 * B * C,
        transcendentals=B * C,
        bytes_accessed=2 * B * C * itemsize + param_bytes,
    )

    tile_spec = pl.BlockSpec((TB, L), lambda i: (i, 0))

    def build(single_buffer_params):
        def param_spec(shape):
            if single_buffer_params:
                # Constant index_map => the block never changes; double-buffering is waste.
                return pl.BlockSpec(shape, lambda i: (0, 0), pipeline_mode=pl.Buffered(1))
            return pl.BlockSpec(shape, lambda i: (0, 0))

        return pl.pallas_call(
            _chromatic_attention_kernel,
            out_shape=jax.ShapeDtypeStruct((Bp_run, L), x.dtype),
            grid_spec=pltpu.PrefetchScalarGridSpec(
                num_scalar_prefetch=0,
                grid=grid,
                in_specs=[
                    tile_spec,                # x tiles, pipelined over the batch
                    param_spec((L, HP)),      # w1 (block-diag, hidden-padded)
                    param_spec((1, HP)),      # b1 (f32)
                    param_spec((HP, L)),      # w2
                    param_spec((1, L)),       # b2 (f32)
                ],
                out_specs=tile_spec,
            ),
            compiler_params=pltpu.CompilerParams(
                dimension_semantics=("parallel",),
                vmem_limit_bytes=vmem_limit,
            ),
            cost_estimate=cost,
        )

    if _PARAM_SINGLE_BUFFER_OK:
        try:
            out = build(True)(xp, w1, b1, w2, b2)
            return (out[:Bp] if Bp_run != Bp else out).reshape(B, C)
        except Exception:
            _PARAM_SINGLE_BUFFER_OK = False   # this jax build rejects Buffered(1); fall back
    out = build(False)(xp, w1, b1, w2, b2)
    return (out[:Bp] if Bp_run != Bp else out).reshape(B, C)


def _reference(x, w1, b1, w2, b2):
    h = jnp.maximum(x @ w1 + b1.reshape(1, -1), 0.0)
    return x * jax.nn.sigmoid(h @ w2 + b2.reshape(1, -1))


if __name__ == "__main__":
    # Module-consistent small config: channels=32, reduction=8 -> hidden=4.
    C, R = 32, 8
    H = C // R
    key = jax.random.PRNGKey(0)
    k1, k2, k3, k4, kx1, kx2, kx3 = jax.random.split(key, 7)

    w1 = jax.random.normal(k1, (C, H), jnp.float32) * 0.1
    b1 = jax.random.normal(k2, (H,), jnp.float32) * 0.1
    w2 = jax.random.normal(k3, (H, C), jnp.float32) * 0.1
    b2 = jax.random.normal(k4, (C,), jnp.float32) * 0.1

    # Tolerance note: MXU f32 matmuls under default precision may use bf16 passes (both in the
    # kernel and in the XLA reference), so f32 checks use a few-1e-3 tolerance; structural bugs
    # (wrong packing / bias / gate) would show up as O(0.1) errors and still be caught.
    TOL = dict(atol=5e-3, rtol=5e-3)

    # 1) Module-default tiny batch (B=2): single block, ragged lane width (C=32 < 128).
    x1 = jax.random.normal(kx1, (2, C), jnp.float32)
    o1 = jax.block_until_ready(chromatic_attention(x1, w1, b1, w2, b2))
    assert o1.shape == (2, C) and o1.dtype == jnp.float32
    assert jnp.allclose(o1, _reference(x1, w1, b1, w2, b2), **TOL), "f32 tiny-batch mismatch"

    # 2) Lane-dense packed path (pack factor 128 // 32 = 4) with a multi-step batch grid.
    x2 = jax.random.normal(kx2, (64, C), jnp.float32)
    o2 = jax.block_until_ready(chromatic_attention(x2, w1, b1, w2, b2))
    assert jnp.allclose(o2, _reference(x2, w1, b1, w2, b2), **TOL), "f32 packed-path mismatch"

    # 3) Ragged batch (not a multiple of the pack factor / tile): exercises masked remainders.
    x3 = jax.random.normal(kx3, (66, C), jnp.float32)
    o3 = jax.block_until_ready(chromatic_attention(x3, w1, b1, w2, b2))
    assert jnp.allclose(o3, _reference(x3, w1, b1, w2, b2), **TOL), "f32 ragged-batch mismatch"

    # 4) bf16 I/O: bf16 MXU operands with f32 accumulation / epilogue.
    x4 = x2.astype(jnp.bfloat16)
    o4 = jax.block_until_ready(chromatic_attention(x4, w1, b1, w2, b2))
    r4 = _reference(x4.astype(jnp.float32), w1, b1, w2, b2)
    assert o4.dtype == jnp.bfloat16 and o4.shape == (64, C)
    assert jnp.allclose(o4.astype(jnp.float32), r4, atol=3e-2, rtol=3e-2), "bf16 mismatch"

    print("KERNEL_OK")
</pallas_src>

<mosaic_0001>
module attributes {stable_mosaic.version = 11 : i64} {
  func.func @_chromatic_attention_kernel(%arg0: i32, %arg1: memref<8x32xf32, #tpu.memory_space<vmem>>, %arg2: memref<32x128xf32, #tpu.memory_space<vmem>>, %arg3: memref<1x128xf32, #tpu.memory_space<vmem>>, %arg4: memref<128x32xf32, #tpu.memory_space<vmem>>, %arg5: memref<1x32xf32, #tpu.memory_space<vmem>>, %arg6: memref<8x32xf32, #tpu.memory_space<vmem>>) attributes {dimension_semantics = [#tpu.dimension_semantics<parallel>], iteration_bounds = array<i64: 1>, scalar_prefetch = 0 : i64, scratch_operands = 0 : i64, tpu.core_type = #tpu.core_type<tc>, window_params = [{transform_indices = @transform_0, window_bounds = array<i64: 8, 32>}, {pipeline_mode = #tpu.pipeline_mode<synchronous>, transform_indices = @transform_1, window_bounds = array<i64: 32, 128>}, {pipeline_mode = #tpu.pipeline_mode<synchronous>, transform_indices = @transform_2, window_bounds = array<i64: 1, 128>}, {pipeline_mode = #tpu.pipeline_mode<synchronous>, transform_indices = @transform_3, window_bounds = array<i64: 128, 32>}, {pipeline_mode = #tpu.pipeline_mode<synchronous>, transform_indices = @transform_4, window_bounds = array<i64: 1, 32>}, {transform_indices = @transform_5, window_bounds = array<i64: 8, 32>}]} {
    %c0 = arith.constant 0 : index
    %c0_0 = arith.constant 0 : index
    %0 = vector.load %arg1[%c0, %c0_0] : memref<8x32xf32, #tpu.memory_space<vmem>>, vector<8x32xf32>
    %c0_1 = arith.constant 0 : index
    %c0_2 = arith.constant 0 : index
    %1 = vector.load %arg2[%c0_1, %c0_2] : memref<32x128xf32, #tpu.memory_space<vmem>>, vector<32x128xf32>
    %cst = arith.constant dense<0.000000e+00> : vector<8x128xf32>
    %2 = tpu.matmul %0, %1, %cst {dimension_numbers = #tpu.dot_dimension_numbers<[1], [0], [0], [1], [0, 0, 1, 1], [], []>} : vector<8x32xf32>, vector<32x128xf32>, vector<8x128xf32> -> vector<8x128xf32>
    %c0_3 = arith.constant 0 : index
    %c0_4 = arith.constant 0 : index
    %3 = vector.load %arg3[%c0_3, %c0_4] : memref<1x128xf32, #tpu.memory_space<vmem>>, vector<1x128xf32>
    %4 = vector.broadcast %3 : vector<1x128xf32> to vector<8x128xf32>
    %5 = arith.addf %2, %4 : vector<8x128xf32>
    %cst_5 = arith.constant 0.000000e+00 : f32
    %6 = vector.broadcast %cst_5 : f32 to vector<8x128xf32>
    %7 = arith.maximumf %5, %6 : vector<8x128xf32>
    %c0_6 = arith.constant 0 : index
    %c0_7 = arith.constant 0 : index
    %8 = vector.load %arg4[%c0_6, %c0_7] : memref<128x32xf32, #tpu.memory_space<vmem>>, vector<128x32xf32>
    %cst_8 = arith.constant dense<0.000000e+00> : vector<8x32xf32>
    %9 = tpu.matmul %7, %8, %cst_8 {dimension_numbers = #tpu.dot_dimension_numbers<[1], [0], [0], [1], [0, 0, 1, 1], [], []>} : vector<8x128xf32>, vector<128x32xf32>, vector<8x32xf32> -> vector<8x32xf32>
    %c0_9 = arith.constant 0 : index
    %c0_10 = arith.constant 0 : index
    %10 = vector.load %arg5[%c0_9, %c0_10] : memref<1x32xf32, #tpu.memory_space<vmem>>, vector<1x32xf32>
    %11 = vector.broadcast %10 : vector<1x32xf32> to vector<8x32xf32>
    %12 = arith.addf %9, %11 : vector<8x32xf32>
    %13 = arith.negf %12 : vector<8x32xf32>
    %14 = math.exp %13 : vector<8x32xf32>
    %cst_11 = arith.constant 1.000000e+00 : f32
    %15 = vector.broadcast %cst_11 : f32 to vector<8x32xf32>
    %16 = arith.addf %15, %14 : vector<8x32xf32>
    %17 = arith.divf %15, %16 : vector<8x32xf32>
    %18 = arith.mulf %0, %17 : vector<8x32xf32>
    %c0_12 = arith.constant 0 : index
    %c0_13 = arith.constant 0 : index
    %19 = vector.load %arg6[%c0_12, %c0_13] : memref<8x32xf32, #tpu.memory_space<vmem>>, vector<8x32xf32>
    tpu.vector_store %arg6[%c0_12, %c0_13], %18 {strides = array<i32>} : memref<8x32xf32, #tpu.memory_space<vmem>>, vector<8x32xf32>,
    return
  }
  func.func @transform_0(%arg0: i32) -> (i32, i32) {
    %c0_i32 = arith.constant 0 : i32
    %c0_i32_0 = arith.constant 0 : i32
    return %arg0, %c0_i32 : i32, i32
  }
  func.func @transform_1(%arg0: i32) -> (i32, i32) {
    %c0_i32 = arith.constant 0 : i32
    %c0_i32_0 = arith.constant 0 : i32
    %c0_i32_1 = arith.constant 0 : i32
    return %c0_i32, %c0_i32_0 : i32, i32
  }
  func.func @transform_2(%arg0: i32) -> (i32, i32) {
    %c0_i32 = arith.constant 0 : i32
    %c0_i32_0 = arith.constant 0 : i32
    %c0_i32_1 = arith.constant 0 : i32
    return %c0_i32, %c0_i32_0 : i32, i32
  }
  func.func @transform_3(%arg0: i32) -> (i32, i32) {
    %c0_i32 = arith.constant 0 : i32
    %c0_i32_0 = arith.constant 0 : i32
    %c0_i32_1 = arith.constant 0 : i32
    return %c0_i32, %c0_i32_0 : i32, i32
  }
  func.func @transform_4(%arg0: i32) -> (i32, i32) {
    %c0_i32 = arith.constant 0 : i32
    %c0_i32_0 = arith.constant 0 : i32
    %c0_i32_1 = arith.constant 0 : i32
    return %c0_i32, %c0_i32_0 : i32, i32
  }
  func.func @transform_5(%arg0: i32) -> (i32, i32) {
    %c0_i32 = arith.constant 0 : i32
    %c0_i32_0 = arith.constant 0 : i32
    return %arg0, %c0_i32 : i32, i32
  }
}

module attributes {stable_mosaic.version = 11 : i64} {
  func.func @_chromatic_attention_kernel(%arg0: i32, %arg1: memref<8x32xf32, #tpu.memory_space<vmem>>, %arg2: memref<32x128xf32, #tpu.memory_space<vmem>>, %arg3: memref<1x128xf32, #tpu.memory_space<vmem>>, %arg4: memref<128x32xf32, #tpu.memory_space<vmem>>, %arg5: memref<1x32xf32, #tpu.memory_space<vmem>>, %arg6: memref<8x32xf32, #tpu.memory_space<vmem>>) attributes {dimension_semantics = [#tpu.dimension_semantics<parallel>], iteration_bounds = array<i64: 1>, scalar_prefetch = 0 : i64, scratch_operands = 0 : i64, tpu.core_type = #tpu.core_type<tc>, window_params = [{transform_indices = @transform_0, window_bounds = array<i64: 8, 32>}, {pipeline_mode = #tpu.pipeline_mode<synchronous>, transform_indices = @transform_1, window_bounds = array<i64: 32, 128>}, {pipeline_mode = #tpu.pipeline_mode<synchronous>, transform_indices = @transform_2, window_bounds = array<i64: 1, 128>}, {pipeline_mode = #tpu.pipeline_mode<synchronous>, transform_indices = @transform_3, window_bounds = array<i64: 128, 32>}, {pipeline_mode = #tpu.pipeline_mode<synchronous>, transform_indices = @transform_4, window_bounds = array<i64: 1, 32>}, {transform_indices = @transform_5, window_bounds = array<i64: 8, 32>}]} {
    %c0 = arith.constant 0 : index
    %c0_0 = arith.constant 0 : index
    %0 = vector.load %arg1[%c0, %c0_0] : memref<8x32xf32, #tpu.memory_space<vmem>>, vector<8x32xf32>
    %c0_1 = arith.constant 0 : index
    %c0_2 = arith.constant 0 : index
    %1 = vector.load %arg2[%c0_1, %c0_2] : memref<32x128xf32, #tpu.memory_space<vmem>>, vector<32x128xf32>
    %cst = arith.constant dense<0.000000e+00> : vector<8x128xf32>
    %2 = tpu.matmul %0, %1, %cst {dimension_numbers = #tpu.dot_dimension_numbers<[1], [0], [0], [1], [0, 0, 1, 1], [], []>} : vector<8x32xf32>, vector<32x128xf32>, vector<8x128xf32> -> vector<8x128xf32>
    %c0_3 = arith.constant 0 : index
    %c0_4 = arith.constant 0 : index
    %3 = vector.load %arg3[%c0_3, %c0_4] : memref<1x128xf32, #tpu.memory_space<vmem>>, vector<1x128xf32>
    %4 = vector.broadcast %3 : vector<1x128xf32> to vector<8x128xf32>
    %5 = arith.addf %2, %4 : vector<8x128xf32>
    %cst_5 = arith.constant 0.000000e+00 : f32
    %6 = vector.broadcast %cst_5 : f32 to vector<8x128xf32>
    %7 = arith.maximumf %5, %6 : vector<8x128xf32>
    %c0_6 = arith.constant 0 : index
    %c0_7 = arith.constant 0 : index
    %8 = vector.load %arg4[%c0_6, %c0_7] : memref<128x32xf32, #tpu.memory_space<vmem>>, vector<128x32xf32>
    %cst_8 = arith.constant dense<0.000000e+00> : vector<8x32xf32>
    %9 = tpu.matmul %7, %8, %cst_8 {dimension_numbers = #tpu.dot_dimension_numbers<[1], [0], [0], [1], [0, 0, 1, 1], [], []>} : vector<8x128xf32>, vector<128x32xf32>, vector<8x32xf32> -> vector<8x32xf32>
    %c0_9 = arith.constant 0 : index
    %c0_10 = arith.constant 0 : index
    %10 = vector.load %arg5[%c0_9, %c0_10] : memref<1x32xf32, #tpu.memory_space<vmem>>, vector<1x32xf32>
    %11 = vector.broadcast %10 : vector<1x32xf32> to vector<8x32xf32>
    %12 = arith.addf %9, %11 : vector<8x32xf32>
    %13 = arith.negf %12 : vector<8x32xf32>
    %14 = math.exp %13 : vector<8x32xf32>
    %cst_11 = arith.constant 1.000000e+00 : f32
    %15 = vector.broadcast %cst_11 : f32 to vector<8x32xf32>
    %16 = arith.addf %15, %14 : vector<8x32xf32>
    %17 = arith.divf %15, %16 : vector<8x32xf32>
    %18 = arith.mulf %0, %17 : vector<8x32xf32>
    %c0_12 = arith.constant 0 : index
    %c0_13 = arith.constant 0 : index
    %19 = vector.load %arg6[%c0_12, %c0_13] : memref<8x32xf32, #tpu.memory_space<vmem>>, vector<8x32xf32>
    tpu.vector_store %arg6[%c0_12, %c0_13], %18 {strides = array<i32>} : memref<8x32xf32, #tpu.memory_space<vmem>>, vector<8x32xf32>,
    return
  }
  func.func @transform_0(%arg0: i32) -> (i32, i32) {
    %c0_i32 = arith.constant 0 : i32
    %c0_i32_0 = arith.constant 0 : i32
    return %arg0, %c0_i32 : i32, i32
  }
  func.func @transform_1(%arg0: i32) -> (i32, i32) {
    %c0_i32 = arith.constant 0 : i32
    %c0_i32_0 = arith.constant 0 : i32
    %c0_i32_1 = arith.constant 0 : i32
    return %c0_i32, %c0_i32_0 : i32, i32
  }
  func.func @transform_2(%arg0: i32) -> (i32, i32) {
    %c0_i32 = arith.constant 0 : i32
    %c0_i32_0 = arith.constant 0 : i32
    %c0_i32_1 = arith.constant 0 : i32
    return %c0_i32, %c0_i32_0 : i32, i32
  }
  func.func @transform_3(%arg0: i32) -> (i32, i32) {
    %c0_i32 = arith.constant 0 : i32
    %c0_i32_0 = arith.constant 0 : i32
    %c0_i32_1 = arith.constant 0 : i32
    return %c0_i32, %c0_i32_0 : i32, i32
  }
  func.func @transform_4(%arg0: i32) -> (i32, i32) {
    %c0_i32 = arith.constant 0 : i32
    %c0_i32_0 = arith.constant 0 : i32
    %c0_i32_1 = arith.constant 0 : i32
    return %c0_i32, %c0_i32_0 : i32, i32
  }
  func.func @transform_5(%arg0: i32) -> (i32, i32) {
    %c0_i32 = arith.constant 0 : i32
    %c0_i32_0 = arith.constant 0 : i32
    return %arg0, %c0_i32 : i32, i32
  }
}

</mosaic_0001>

<llo_original>
// kernel: tpu_custom_call.1
$region0: #{tpu_custom_call.1}
  #allocation0 [shape = 'u32[]', space=smem, size = 0x4, offset = 0x4, fixed_abs, tag = 'smem constant byte address 0x4 - core index']
  #allocation1 [shape = 'u32[72,128]{1,0:T(1,128)}', space=vmem, size = 0x9000, scoped, tag = 'internal scratch']
  %s0 = inlined_call_operand.vmem [shape: f32[8,32], index: 0, kind: input, shape index: {}]
  %s1 = inlined_call_operand.vmem [shape: f32[32,128], index: 1, kind: input, shape index: {}]
  %s2 = inlined_call_operand.vmem [shape: f32[1,128], index: 2, kind: input, shape index: {}]
  %s3 = inlined_call_operand.vmem [shape: f32[128,32], index: 3, kind: input, shape index: {}]
  %s4 = inlined_call_operand.vmem [shape: f32[1,32], index: 4, kind: input, shape index: {}]
  %s5 = inlined_call_operand.hbm [shape: f32[8,32], index: 5, kind: output, shape index: {}]
  %s6 = sld [smem:[#allocation0]]
  $region30: #{tpu_custom_call.1} parent=0
    _
  %s8 = ssub.s32 1, %s6
  %s9 = scalar_select 0, %s8, %s6
  $region1: #{tpu_custom_call.1} parent=0
    #allocation2 [shape = 'u8[4096]{0}', space=vmem, size = 0x1000, scoped, tag = 'output window, operand 0, single buffered']
    #allocation3 [shape = 's32[1]{0}', space=sflag, size = 0x4, scoped, tag = 'scoped memory for tpu_custom_call.1']
    %10 = vsyncpa [#allocation3], 0
    // Predicated region
    $region2: #{tpu_custom_call.1} parent=1 // pred_check
      _
    $region3: #{tpu_custom_call.1} parent=1 // pred_check_branch
      %12 = sbr.rel (0) target = $region5
    $region4: #{tpu_custom_call.1} parent=1 // pred_region
      _
    $region5: #{tpu_custom_call.1} parent=1 // pred_fallthru
      _
    // Predicated region
    $region6: #{tpu_custom_call.1} parent=1 // pred_check
      _
    $region7: #{tpu_custom_call.1} parent=1 // pred_check_branch
      %14 = sbr.rel (0) target = $region9
    $region8: #{tpu_custom_call.1} parent=1 // pred_region
      _
    $region9: #{tpu_custom_call.1} parent=1 // pred_fallthru
      _
    // Predicated region
    $region10: #{tpu_custom_call.1} parent=1 // pred_check
      _
    $region11: #{tpu_custom_call.1} parent=1 // pred_check_branch
      %16 = sbr.rel (0) target = $region13
    $region12: #{tpu_custom_call.1} parent=1 // pred_region
      _
    $region13: #{tpu_custom_call.1} parent=1 // pred_fallthru
      _
    // Predicated region
    $region14: #{tpu_custom_call.1} parent=1 // pred_check
      _
    $region15: #{tpu_custom_call.1} parent=1 // pred_check_branch
      %18 = sbr.rel (0) target = $region17
    $region16: #{tpu_custom_call.1} parent=1 // pred_region
      _
    $region17: #{tpu_custom_call.1} parent=1 // pred_fallthru
      _
    // Predicated region
    $region18: #{tpu_custom_call.1} parent=1 // pred_check
      _
    $region19: #{tpu_custom_call.1} parent=1 // pred_check_branch
      %20 = sbr.rel (0) target = $region21
    $region20: #{tpu_custom_call.1} parent=1 // pred_region
      _
    $region21: #{tpu_custom_call.1} parent=1 // pred_fallthru
      _
    %v21 = vld [vmem:[%s0] sm:$0xff]
    %v22 = vld [vmem:[%s1] sm:$0xff]
    %v23 = vld [vmem:[%s1 + $0x8] sm:$0xff]
    %v24 = vld [vmem:[%s1 + $0x10] sm:$0xff]
    %v25 = vld [vmem:[%s1 + $0x18] sm:$0xff]
    %v26 = vld [vmem:[%s2] sm:$0x1]
    %v28 = vperm.slane %v26, 0
    %vm30 = vcmask 261120
    %v32 = vsel %vm30, %v21, 0
    %34 = vmatpush.msra.mxu0 0.0
    %35 = vmatpush.msra.mxu0 0.0
    %36 = vmatpush.msra.mxu0 0.0
    %37 = vmatpush.msra.mxu0 0.0
    %38 = vmatpush.msra.mxu0 0.0
    %39 = vmatpush.msra.mxu0 0.0
    %40 = vmatpush.msra.mxu0 0.0
    %41 = vmatpush.msra.mxu0 0.0
    %42 = vmatpush.msra.mxu0 0.0
    %43 = vmatpush.msra.mxu0 0.0
    %44 = vmatpush.msra.mxu0 0.0
    %45 = vmatpush.msra.mxu0 0.0
    %46 = vmatpush.msra.mxu0 %v25
    %47 = vmatpush.msra.mxu0 %v24
    %48 = vmatpush.msra.mxu0 %v23
    %49 = vmatpush.msra.mxu0 %v22
    %50 = vmatmul.f32.gmra.mxu0 %v32
    %v51 = vpop.f32.mrf.mxu0
    %v52 = vadd.f32 %v28, %v51
    %53 = vdwg.mxu0
    %v54 = vmax.f32 %v52, 0.0
    %v55 = vld [vmem:[%s3] sm:$0xff]
    %v56 = vld [vmem:[%s3 + $0x8] sm:$0xff]
    %v57 = vld [vmem:[%s3 + $0x10] sm:$0xff]
    %v58 = vld [vmem:[%s3 + $0x18] sm:$0xff]
    %v59 = vld [vmem:[%s3 + $0x20] sm:$0xff]
    %v60 = vld [vmem:[%s3 + $0x28] sm:$0xff]
    %v61 = vld [vmem:[%s3 + $0x30] sm:$0xff]
    %v62 = vld [vmem:[%s3 + $0x38] sm:$0xff]
    %v63 = vld [vmem:[%s3 + $0x40] sm:$0xff]
    %v64 = vld [vmem:[%s3 + $0x48] sm:$0xff]
    %v65 = vld [vmem:[%s3 + $0x50] sm:$0xff]
    %v66 = vld [vmem:[%s3 + $0x58] sm:$0xff]
    %v67 = vld [vmem:[%s3 + $0x60] sm:$0xff]
    %v68 = vld [vmem:[%s3 + $0x68] sm:$0xff]
    %v69 = vld [vmem:[%s3 + $0x70] sm:$0xff]
    %v70 = vld [vmem:[%s3 + $0x78] sm:$0xff]
    %v71 = vld [vmem:[%s4] sm:$0x1]
    %v73 = vperm.slane %v71, 0
    %75 = vmatpush.msra.mxu0 %v70
    %76 = vmatpush.msra.mxu0 %v69
    %77 = vmatpush.msra.mxu0 %v68
    %78 = vmatpush.msra.mxu0 %v67
    %79 = vmatpush.msra.mxu0 %v66
    %80 = vmatpush.msra.mxu0 %v65
    %81 = vmatpush.msra.mxu0 %v64
    %82 = vmatpush.msra.mxu0 %v63
    %83 = vmatpush.msra.mxu0 %v62
    %84 = vmatpush.msra.mxu0 %v61
    %85 = vmatpush.msra.mxu0 %v60
    %86 = vmatpush.msra.mxu0 %v59
    %87 = vmatpush.msra.mxu0 %v58
    %88 = vmatpush.msra.mxu0 %v57
    %89 = vmatpush.msra.mxu0 %v56
    %90 = vmatpush.msra.mxu0 %v55
    %91 = vmatmul.f32.gmra.mxu0 %v54
    %v92 = vpop.f32.mrf.mxu0
    %v93 = vadd.f32 %v73, %v92
    %94 = vdwg.mxu0
    %v95 = vxor.u32 %v93, 2147483648
    %v96 = vmul.f32 %v95, 1.442695
    %v97 = vpow.pop %v96
    %v98 = vadd.f32 %v97, 1.0
    %v99 = vrcp.pop %v98
    %v100 = vmul.f32 %v98, %v99
    %v101 = vsub.f32 1.0, %v100
    %v102 = vmul.f32 %v99, %v101
    %v103 = vadd.f32 %v99, %v102
    %vm104 = vweird.f32 %v98
    %vm105 = vweird.f32 %v99
    %vm106 = vmor %vm104, %vm105
    %v107 = vsel %vm106, %v99, %v103
    %v108 = vand.u32 2147483647, %v98
    %vm109 = vcmp.eq.f32.partialorder %v108, 8.507059e+37
    %v110 = vand.u32 %v98, 2147483648
    %v111 = vor.u32 1.1754944e-38, %v110
    %v112 = vsel %vm109, %v111, %v107
    %v113 = vmul.f32 1.0, %v112
    %v114 = vmul.f32 %v21, %v113
    %115 = vst.msk [vmem:[#allocation2] sm:$0xff] %vm30, %v114
    // Predicated region
    $region22: #{tpu_custom_call.1} parent=1 // pred_check
      _
    $region23: #{tpu_custom_call.1} parent=1 // pred_check_branch
      %117 = sbr.rel (0) target = $region25
    $region24: #{tpu_custom_call.1} parent=1 // pred_region
      %119 = vsyncadd [#allocation3], 0
      %s121 = sshll.u32 [#allocation2], 4
      %s122 = int_to_ptr.vmem [resolvable:$true] %s121
      %s123 = sshll.u32 %s5, 4
      %s124 = int_to_ptr.hbm [resolvable:$true] %s123
      %126 = dma.vmem_to_hbm [thread:$0]  %s122, 128, %s124, [#allocation3]
    $region25: #{tpu_custom_call.1} parent=1 // pred_fallthru
      _
    // Predicated region
    $region26: #{tpu_custom_call.1} parent=1 // pred_check
      _
    $region27: #{tpu_custom_call.1} parent=1 // pred_check_branch
      %128 = sbr.rel (0) target = $region29
    $region28: #{tpu_custom_call.1} parent=1 // pred_region
      %130 = dma.done [#allocation3], 128
    $region29: #{tpu_custom_call.1} parent=1 // pred_fallthru
      _
    %131 = vsyncpa [#allocation3], 1

// kernel: tpu_custom_call.1
$region0: #{tpu_custom_call.1}
  #allocation0 [shape = 'u32[]', space=smem, size = 0x4, offset = 0x4, fixed_abs, tag = 'smem constant byte address 0x4 - core index']
  #allocation1 [shape = 'u32[72,128]{1,0:T(1,128)}', space=vmem, size = 0x9000, scoped, tag = 'internal scratch']
  %s0 = inlined_call_operand.vmem [shape: f32[8,32], index: 0, kind: input, shape index: {}]
  %s1 = inlined_call_operand.vmem [shape: f32[32,128], index: 1, kind: input, shape index: {}]
  %s2 = inlined_call_operand.vmem [shape: f32[1,128], index: 2, kind: input, shape index: {}]
  %s3 = inlined_call_operand.vmem [shape: f32[128,32], index: 3, kind: input, shape index: {}]
  %s4 = inlined_call_operand.vmem [shape: f32[1,32], index: 4, kind: input, shape index: {}]
  %s5 = inlined_call_operand.hbm [shape: f32[8,32], index: 5, kind: output, shape index: {}]
  %s6 = sld [smem:[#allocation0]]
  $region30: #{tpu_custom_call.1} parent=0
    _
  %s8 = ssub.s32 1, %s6
  %s9 = scalar_select 0, %s8, %s6
  $region1: #{tpu_custom_call.1} parent=0
    #allocation2 [shape = 'u8[4096]{0}', space=vmem, size = 0x1000, scoped, tag = 'output window, operand 0, single buffered']
    #allocation3 [shape = 's32[1]{0}', space=sflag, size = 0x4, scoped, tag = 'scoped memory for tpu_custom_call.1']
    %10 = vsyncpa [#allocation3], 0
    // Predicated region
    $region2: #{tpu_custom_call.1} parent=1 // pred_check
      _
    $region3: #{tpu_custom_call.1} parent=1 // pred_check_branch
      %12 = sbr.rel (0) target = $region5
    $region4: #{tpu_custom_call.1} parent=1 // pred_region
      _
    $region5: #{tpu_custom_call.1} parent=1 // pred_fallthru
      _
    // Predicated region
    $region6: #{tpu_custom_call.1} parent=1 // pred_check
      _
    $region7: #{tpu_custom_call.1} parent=1 // pred_check_branch
      %14 = sbr.rel (0) target = $region9
    $region8: #{tpu_custom_call.1} parent=1 // pred_region
      _
    $region9: #{tpu_custom_call.1} parent=1 // pred_fallthru
      _
    // Predicated region
    $region10: #{tpu_custom_call.1} parent=1 // pred_check
      _
    $region11: #{tpu_custom_call.1} parent=1 // pred_check_branch
      %16 = sbr.rel (0) target = $region13
    $region12: #{tpu_custom_call.1} parent=1 // pred_region
      _
    $region13: #{tpu_custom_call.1} parent=1 // pred_fallthru
      _
    // Predicated region
    $region14: #{tpu_custom_call.1} parent=1 // pred_check
      _
    $region15: #{tpu_custom_call.1} parent=1 // pred_check_branch
      %18 = sbr.rel (0) target = $region17
    $region16: #{tpu_custom_call.1} parent=1 // pred_region
      _
    $region17: #{tpu_custom_call.1} parent=1 // pred_fallthru
      _
    // Predicated region
    $region18: #{tpu_custom_call.1} parent=1 // pred_check
      _
    $region19: #{tpu_custom_call.1} parent=1 // pred_check_branch
      %20 = sbr.rel (0) target = $region21
    $region20: #{tpu_custom_call.1} parent=1 // pred_region
      _
    $region21: #{tpu_custom_call.1} parent=1 // pred_fallthru
      _
    %v21 = vld [vmem:[%s0] sm:$0xff]
    %v22 = vld [vmem:[%s1] sm:$0xff]
    %v23 = vld [vmem:[%s1 + $0x8] sm:$0xff]
    %v24 = vld [vmem:[%s1 + $0x10] sm:$0xff]
    %v25 = vld [vmem:[%s1 + $0x18] sm:$0xff]
    %v26 = vld [vmem:[%s2] sm:$0x1]
    %v28 = vperm.slane %v26, 0
    %vm30 = vcmask 261120
    %v32 = vsel %vm30, %v21, 0
    %34 = vmatpush.msra.mxu0 0.0
    %35 = vmatpush.msra.mxu0 0.0
    %36 = vmatpush.msra.mxu0 0.0
    %37 = vmatpush.msra.mxu0 0.0
    %38 = vmatpush.msra.mxu0 0.0
    %39 = vmatpush.msra.mxu0 0.0
    %40 = vmatpush.msra.mxu0 0.0
    %41 = vmatpush.msra.mxu0 0.0
    %42 = vmatpush.msra.mxu0 0.0
    %43 = vmatpush.msra.mxu0 0.0
    %44 = vmatpush.msra.mxu0 0.0
    %45 = vmatpush.msra.mxu0 0.0
    %46 = vmatpush.msra.mxu0 %v25
    %47 = vmatpush.msra.mxu0 %v24
    %48 = vmatpush.msra.mxu0 %v23
    %49 = vmatpush.msra.mxu0 %v22
    %50 = vmatmul.f32.gmra.mxu0 %v32
    %v51 = vpop.f32.mrf.mxu0
    %v52 = vadd.f32 %v28, %v51
    %53 = vdwg.mxu0
    %v54 = vmax.f32 %v52, 0.0
    %v55 = vld [vmem:[%s3] sm:$0xff]
    %v56 = vld [vmem:[%s3 + $0x8] sm:$0xff]
    %v57 = vld [vmem:[%s3 + $0x10] sm:$0xff]
    %v58 = vld [vmem:[%s3 + $0x18] sm:$0xff]
    %v59 = vld [vmem:[%s3 + $0x20] sm:$0xff]
    %v60 = vld [vmem:[%s3 + $0x28] sm:$0xff]
    %v61 = vld [vmem:[%s3 + $0x30] sm:$0xff]
    %v62 = vld [vmem:[%s3 + $0x38] sm:$0xff]
    %v63 = vld [vmem:[%s3 + $0x40] sm:$0xff]
    %v64 = vld [vmem:[%s3 + $0x48] sm:$0xff]
    %v65 = vld [vmem:[%s3 + $0x50] sm:$0xff]
    %v66 = vld [vmem:[%s3 + $0x58] sm:$0xff]
    %v67 = vld [vmem:[%s3 + $0x60] sm:$0xff]
    %v68 = vld [vmem:[%s3 + $0x68] sm:$0xff]
    %v69 = vld [vmem:[%s3 + $0x70] sm:$0xff]
    %v70 = vld [vmem:[%s3 + $0x78] sm:$0xff]
    %v71 = vld [vmem:[%s4] sm:$0x1]
    %v73 = vperm.slane %v71, 0
    %75 = vmatpush.msra.mxu0 %v70
    %76 = vmatpush.msra.mxu0 %v69
    %77 = vmatpush.msra.mxu0 %v68
    %78 = vmatpush.msra.mxu0 %v67
    %79 = vmatpush.msra.mxu0 %v66
    %80 = vmatpush.msra.mxu0 %v65
    %81 = vmatpush.msra.mxu0 %v64
    %82 = vmatpush.msra.mxu0 %v63
    %83 = vmatpush.msra.mxu0 %v62
    %84 = vmatpush.msra.mxu0 %v61
    %85 = vmatpush.msra.mxu0 %v60
    %86 = vmatpush.msra.mxu0 %v59
    %87 = vmatpush.msra.mxu0 %v58
    %88 = vmatpush.msra.mxu0 %v57
    %89 = vmatpush.msra.mxu0 %v56
    %90 = vmatpush.msra.mxu0 %v55
    %91 = vmatmul.f32.gmra.mxu0 %v54
    %v92 = vpop.f32.mrf.mxu0
    %v93 = vadd.f32 %v73, %v92
    %94 = vdwg.mxu0
    %v95 = vxor.u32 %v93, 2147483648
    %v96 = vmul.f32 %v95, 1.442695
    %v97 = vpow.pop %v96
    %v98 = vadd.f32 %v97, 1.0
    %v99 = vrcp.pop %v98
    %v100 = vmul.f32 %v98, %v99
    %v101 = vsub.f32 1.0, %v100
    %v102 = vmul.f32 %v99, %v101
    %v103 = vadd.f32 %v99, %v102
    %vm104 = vweird.f32 %v98
    %vm105 = vweird.f32 %v99
    %vm106 = vmor %vm104, %vm105
    %v107 = vsel %vm106, %v99, %v103
    %v108 = vand.u32 2147483647, %v98
    %vm109 = vcmp.eq.f32.partialorder %v108, 8.507059e+37
    %v110 = vand.u32 %v98, 2147483648
    %v111 = vor.u32 1.1754944e-38, %v110
    %v112 = vsel %vm109, %v111, %v107
    %v113 = vmul.f32 1.0, %v112
    %v114 = vmul.f32 %v21, %v113
    %115 = vst.msk [vmem:[#allocation2] sm:$0xff] %vm30, %v114
    // Predicated region
    $region22: #{tpu_custom_call.1} parent=1 // pred_check
      _
    $region23: #{tpu_custom_call.1} parent=1 // pred_check_branch
      %117 = sbr.rel (0) target = $region25
    $region24: #{tpu_custom_call.1} parent=1 // pred_region
      %119 = vsyncadd [#allocation3], 0
      %s121 = sshll.u32 [#allocation2], 4
      %s122 = int_to_ptr.vmem [resolvable:$true] %s121
      %s123 = sshll.u32 %s5, 4
      %s124 = int_to_ptr.hbm [resolvable:$true] %s123
      %126 = dma.vmem_to_hbm [thread:$0]  %s122, 128, %s124, [#allocation3]
    $region25: #{tpu_custom_call.1} parent=1 // pred_fallthru
      _
    // Predicated region
    $region26: #{tpu_custom_call.1} parent=1 // pred_check
      _
    $region27: #{tpu_custom_call.1} parent=1 // pred_check_branch
      %128 = sbr.rel (0) target = $region29
    $region28: #{tpu_custom_call.1} parent=1 // pred_region
      %130 = dma.done [#allocation3], 128
    $region29: #{tpu_custom_call.1} parent=1 // pred_fallthru
      _
    %131 = vsyncpa [#allocation3], 1

</llo_original>
